<compile_context>
chip_gen: v7x
topology: tpu7x:2x2x1
jax: 0.10.0
libtpu: 0.0.40
codegen_flags: <defaults>
</compile_context>

<pallas_src>
import functools
import math

import jax
import jax.numpy as jnp
from jax.experimental import pallas as pl
from jax.experimental.pallas import tpu as pltpu


def _round_up(v, m):
    return (v + m - 1) // m * m


def _cdiv(a, b):
    return -(-a // b)


_NUM_TENSORCORES = None


def _get_num_tensorcores():
    """Best-effort TensorCore count per device (v5e/v6e: 1, v7x: 2).

    Narrow, guarded hardware-info query only -- never wraps kernel execution.
    Falls back to 1 (correct everywhere, slightly conservative on v7x).
    """
    global _NUM_TENSORCORES
    if _NUM_TENSORCORES is not None:
        return _NUM_TENSORCORES
    n = 1
    try:
        info = pltpu.get_tpu_info()
        for name in ("num_cores", "core_count", "num_tensorcores", "tensorcore_count"):
            v = getattr(info, name, None)
            if isinstance(v, int) and v > 0:
                n = v
                break
    except Exception:
        pass
    if n == 1:
        try:
            v = getattr(jax.devices()[0], "num_cores", None)
            if isinstance(v, int) and v > 0:
                n = v
        except Exception:
            pass
    _NUM_TENSORCORES = n
    return n


# -----------------------------------------------------------------------------
# Kernel: fully fused MLP chain, one batch tile per grid step.
# -----------------------------------------------------------------------------
def _mlp_chain_kernel(dims_padded, relu_flags, x_ref, w_ref, b_ref, out_ref):
    """out = L_n(...relu(L_1(x))...) entirely in VMEM.

    x_ref   : (bt, n_in_eff)    f32   (cast to bf16 in-kernel)
    w_ref   : (L, K_max, N_max) bf16  stacked, zero-padded, pre-transposed weights
    b_ref   : (L, 1, N_max)     f32   stacked, zero-padded biases
    out_ref : (bt, n_out_pad)   f32   lane-dense (multiple of 128) output tile

    dims_padded[i] = (kin_i, nout_pad_i): static slice widths into the stacks.
    relu_flags[i]  = compile-time bool: ReLU after layer i.
    """
    n_layers = len(relu_flags)
    h = x_ref[...].astype(jnp.bfloat16)           # f32 -> bf16 cast on the VPU
    for i, (kin, nout_p) in enumerate(dims_padded):
        w = w_ref[i, :kin, :nout_p]               # static, tile-aligned slice (bf16)
        b = b_ref[i, :, :nout_p]                  # (1, nout_p) f32
        acc = jnp.dot(h, w, preferred_element_type=jnp.float32) + b
        if relu_flags[i]:
            acc = jnp.maximum(acc, 0.0)           # ReLU on f32 acc (v5e VPU has no bf16)
        if i + 1 < n_layers:
            h = acc.astype(jnp.bfloat16)          # bf16 feeds the next MXU pass
        else:
            out_ref[...] = acc                    # f32 store, no final bf16 rounding


# -----------------------------------------------------------------------------
# One-time parameter preparation (do NOT call per forward).
# -----------------------------------------------------------------------------
def prepare_count_autoencoder_params(params, relu_flags):
    """Pad every layer to lane-dense multiples of 128, cast weights to bf16 and
    stack into two operands.  Returns everything the jitted forward needs.

    params[i] = (w_i, b_i): w_i (n_in_i, n_out_i) f32 (already (in, out)),
                            b_i (1, n_out_i) f32.
    """
    L = len(params)
    n_in_real = params[0][0].shape[0]
    n_out_real = params[-1][0].shape[1]

    dims_padded = []
    for i, (w, _) in enumerate(params):
        nin, nout = w.shape
        # layer 0 consumes the (16-aligned) unpadded x; later layers consume the
        # 128-padded output of the previous layer.
        kin = _round_up(nin, 16) if i == 0 else _round_up(nin, 128)
        dims_padded.append((kin, _round_up(nout, 128)))

    K_max = _round_up(max(k for k, _ in dims_padded), 8)
    N_max = max(n for _, n in dims_padded)

    # TODO(synk): stacking pads every layer to (K_max, N_max); for strongly
    # heterogeneous real widths (e.g. n_input in the thousands) switch back to
    # per-layer operands to avoid the padding blow-up.
    w_stack = jnp.zeros((L, K_max, N_max), jnp.float32)
    b_stack = jnp.zeros((L, 1, N_max), jnp.float32)
    for i, (w, b) in enumerate(params):
        nin, nout = w.shape
        w_stack = w_stack.at[i, :nin, :nout].set(w)
        b_stack = b_stack.at[i, :, :nout].set(b)

    return (w_stack.astype(jnp.bfloat16),      # bf16 weights (MXU-native)
            b_stack,                           # f32 biases
            tuple(dims_padded),
            tuple(bool(f) for f in relu_flags),
            int(n_in_real),
            int(n_out_real))


# -----------------------------------------------------------------------------
# Jitted forward.
# -----------------------------------------------------------------------------
@functools.partial(
    jax.jit,
    static_argnames=("dims_padded", "relu_flags", "n_out", "n_cores"))
def _forward_impl(x, w_stack, b_stack, *, dims_padded, relu_flags, n_out, n_cores):
    B = x.shape[0]
    n_in_eff = dims_padded[0][0]
    n_out_pad = dims_padded[-1][1]
    L, K_max, N_max = w_stack.shape

    # ---- VMEM budget (conservative against v7x's 32 MiB scoped default) --------
    param_bytes = w_stack.size * 2 + b_stack.size * 4
    fixed_bytes = 2 * param_bytes                         # param buffers (double-alloc)
    per_row = 2 * n_in_eff * 4 + 2 * n_out_pad * 4 + 4 * N_max * 4
    budget = 24 << 20
    bt_cap = max(16, ((budget - fixed_bytes) // per_row) // 16 * 16)

    # ---- per-generation batch tile ----------------------------------------------
    # single-core (v5e/v6e): one full-batch tile (extra grid steps only add overhead)
    # multi-core (v7x): >=2 steps per TensorCore so DMA overlaps compute per core
    if n_cores > 1:
        bt = _round_up(_cdiv(B, 2 * n_cores), 16)
    else:
        bt = _round_up(B, 16)
    bt = max(16, min(bt, bt_cap))
    B_pad = _round_up(B, bt)

    pad_b = B_pad - B
    pad_f = n_in_eff - x.shape[1]
    if pad_b or pad_f:
        x = jnp.pad(x, ((0, pad_b), (0, pad_f)))

    vmem_limit = int(min(max(2 * (fixed_bytes + bt * per_row), 8 << 20), 32 << 20))

    kernel = functools.partial(_mlp_chain_kernel, dims_padded, relu_flags)

    y_pad = pl.pallas_call(
        kernel,
        out_shape=jax.ShapeDtypeStruct((B_pad, n_out_pad), jnp.float32),
        grid_spec=pltpu.PrefetchScalarGridSpec(
            num_scalar_prefetch=0,
            grid=(B_pad // bt,),
            in_specs=[
                # x tile: last dim = full (unpadded) feature extent -> legal block
                pl.BlockSpec((bt, n_in_eff), lambda i: (i, 0)),
                # constant index_map -> Pallas skips re-fetch after step 0, so the
                # stacked params are DMA'd into VMEM exactly once.
                pl.BlockSpec((L, K_max, N_max), lambda i: (0, 0, 0)),
                pl.BlockSpec((L, 1, N_max), lambda i: (0, 0, 0)),
            ],
            out_specs=pl.BlockSpec((bt, n_out_pad), lambda i: (i, 0)),
        ),
        compiler_params=pltpu.CompilerParams(
            dimension_semantics=("parallel",),
            vmem_limit_bytes=vmem_limit),
    )(x, w_stack, b_stack)

    # slice stays inside jit (fuses with the consumer); output is f32.
    return y_pad[:B, :n_out]


def count_autoencoder_forward(x, prepared):
    w_stack, b_stack, dims_padded, relu_flags, _n_in, n_out = prepared
    return _forward_impl(x, w_stack, b_stack,
                         dims_padded=dims_padded, relu_flags=relu_flags,
                         n_out=n_out, n_cores=_get_num_tensorcores())


# -----------------------------------------------------------------------------
# Parameter init (matches nn.Linear defaults: U(-1/sqrt(fan_in), 1/sqrt(fan_in))).
# -----------------------------------------------------------------------------
def init_count_autoencoder(key, *, n_input, n_latent, layers):
    dims = [n_input] + list(layers) + [n_latent]
    enc_pairs = list(zip(dims[:-1], dims[1:]))
    rdims = dims[::-1]
    dec_pairs = list(zip(rdims[:-1], rdims[1:]))

    params, relu_flags = [], []
    for pairs in (enc_pairs, dec_pairs):
        for j, (nin, nout) in enumerate(pairs):
            key, kw, kb = jax.random.split(key, 3)
            bound = 1.0 / math.sqrt(nin)
            w = jax.random.uniform(kw, (nin, nout), jnp.float32, -bound, bound)
            b = jax.random.uniform(kb, (1, nout), jnp.float32, -bound, bound)
            params.append((w, b))
            # ReLU between FC layers; no activation on the last Linear of each half.
            relu_flags.append(j < len(pairs) - 1)
    return params, relu_flags


def _reference_forward(x, params, relu_flags, *, emulate_bf16=False):
    """Pure-JAX reference. emulate_bf16 mimics the kernel's mixed-precision path."""
    h = x
    for (w, b), do_relu in zip(params, relu_flags):
        if emulate_bf16:
            acc = jnp.dot(h.astype(jnp.bfloat16), w.astype(jnp.bfloat16),
                          preferred_element_type=jnp.float32) + b
        else:
            acc = h @ w + b
        if do_relu:
            acc = jnp.maximum(acc, 0.0)
        h = acc
    return h.astype(jnp.float32)


if __name__ == "__main__":
    key = jax.random.PRNGKey(0)
    n_input, n_latent, layers = 64, 16, [32]
    batch = 256

    kx, kp = jax.random.split(key)
    # non-negative "count-like" inputs
    x = jax.random.uniform(kx, (batch, n_input), jnp.float32, 0.0, 5.0)
    params, relu_flags = init_count_autoencoder(
        kp, n_input=n_input, n_latent=n_latent, layers=layers)

    # one-time prep (pad + bf16-cast + stack) -- NOT part of the per-call path
    prepared = prepare_count_autoencoder_params(params, relu_flags)

    y = count_autoencoder_forward(x, prepared)
    y = jax.block_until_ready(y)

    assert y.shape == (batch, n_input)
    assert y.dtype == jnp.float32

    # tight check vs. a reference that follows the same mixed-precision path
    y_ref_bf16 = _reference_forward(x, params, relu_flags, emulate_bf16=True)
    assert jnp.allclose(y, y_ref_bf16, atol=1e-2, rtol=1e-2), "mismatch vs bf16 reference"

    # sanity check vs. the full-f32 reference (bf16 quantization tolerance)
    y_ref_f32 = _reference_forward(x, params, relu_flags, emulate_bf16=False)
    assert jnp.allclose(y, y_ref_f32, atol=1e-1, rtol=1e-1), "mismatch vs f32 reference"

    print("KERNEL_OK")
</pallas_src>

<mosaic_0001>
module attributes {stable_mosaic.version = 11 : i64} {
  func.func @_mlp_chain_kernel(%arg0: i32, %arg1: memref<256x64xf32, #tpu.memory_space<vmem>>, %arg2: memref<4x128x128xbf16, #tpu.memory_space<vmem>>, %arg3: memref<4x1x128xf32, #tpu.memory_space<vmem>>, %arg4: memref<256x128xf32, #tpu.memory_space<vmem>>) attributes {dimension_semantics = [#tpu.dimension_semantics<parallel>], iteration_bounds = array<i64: 1>, scalar_prefetch = 0 : i64, scratch_operands = 0 : i64, tpu.core_type = #tpu.core_type<tc>, window_params = [{transform_indices = @transform_0, window_bounds = array<i64: 256, 64>}, {pipeline_mode = #tpu.pipeline_mode<synchronous>, transform_indices = @transform_1, window_bounds = array<i64: 4, 128, 128>}, {pipeline_mode = #tpu.pipeline_mode<synchronous>, transform_indices = @transform_2, window_bounds = array<i64: 4, 1, 128>}, {transform_indices = @transform_3, window_bounds = array<i64: 256, 128>}]} {
    %c0 = arith.constant 0 : index
    %c0_0 = arith.constant 0 : index
    %0 = vector.load %arg1[%c0, %c0_0] : memref<256x64xf32, #tpu.memory_space<vmem>>, vector<256x64xf32>
    %1 = arith.truncf %0 : vector<256x64xf32> to vector<256x64xbf16>
    %c0_1 = arith.constant 0 : index
    %c0_2 = arith.constant 0 : index
    %c0_3 = arith.constant 0 : index
    %2 = vector.load %arg2[%c0_1, %c0_2, %c0_3] : memref<4x128x128xbf16, #tpu.memory_space<vmem>>, vector<1x64x128xbf16>
    %3 = vector.shape_cast %2 : vector<1x64x128xbf16> to vector<64x128xbf16>
    %c0_4 = arith.constant 0 : index
    %c0_5 = arith.constant 0 : index
    %c0_6 = arith.constant 0 : index
    %4 = vector.load %arg3[%c0_4, %c0_5, %c0_6] : memref<4x1x128xf32, #tpu.memory_space<vmem>>, vector<1x1x128xf32>
    %5 = vector.shape_cast %4 : vector<1x1x128xf32> to vector<1x128xf32>
    %cst = arith.constant dense<0.000000e+00> : vector<256x128xf32>
    %6 = tpu.matmul %1, %3, %cst {dimension_numbers = #tpu.dot_dimension_numbers<[1], [0], [0], [1], [0, 0, 1, 1], [], []>} : vector<256x64xbf16>, vector<64x128xbf16>, vector<256x128xf32> -> vector<256x128xf32>
    %7 = vector.broadcast %5 : vector<1x128xf32> to vector<256x128xf32>
    %8 = arith.addf %6, %7 : vector<256x128xf32>
    %cst_7 = arith.constant 0.000000e+00 : f32
    %9 = vector.broadcast %cst_7 : f32 to vector<256x128xf32>
    %10 = arith.maximumf %8, %9 : vector<256x128xf32>
    %11 = arith.truncf %10 : vector<256x128xf32> to vector<256x128xbf16>
    %c1 = arith.constant 1 : index
    %c0_8 = arith.constant 0 : index
    %c0_9 = arith.constant 0 : index
    %12 = vector.load %arg2[%c1, %c0_8, %c0_9] : memref<4x128x128xbf16, #tpu.memory_space<vmem>>, vector<1x128x128xbf16>
    %13 = vector.shape_cast %12 : vector<1x128x128xbf16> to vector<128x128xbf16>
    %c1_10 = arith.constant 1 : index
    %c0_11 = arith.constant 0 : index
    %c0_12 = arith.constant 0 : index
    %14 = vector.load %arg3[%c1_10, %c0_11, %c0_12] : memref<4x1x128xf32, #tpu.memory_space<vmem>>, vector<1x1x128xf32>
    %15 = vector.shape_cast %14 : vector<1x1x128xf32> to vector<1x128xf32>
    %cst_13 = arith.constant dense<0.000000e+00> : vector<256x128xf32>
    %16 = tpu.matmul %11, %13, %cst_13 {dimension_numbers = #tpu.dot_dimension_numbers<[1], [0], [0], [1], [0, 0, 1, 1], [], []>} : vector<256x128xbf16>, vector<128x128xbf16>, vector<256x128xf32> -> vector<256x128xf32>
    %17 = vector.broadcast %15 : vector<1x128xf32> to vector<256x128xf32>
    %18 = arith.addf %16, %17 : vector<256x128xf32>
    %19 = arith.truncf %18 : vector<256x128xf32> to vector<256x128xbf16>
    %c2 = arith.constant 2 : index
    %c0_14 = arith.constant 0 : index
    %c0_15 = arith.constant 0 : index
    %20 = vector.load %arg2[%c2, %c0_14, %c0_15] : memref<4x128x128xbf16, #tpu.memory_space<vmem>>, vector<1x128x128xbf16>
    %21 = vector.shape_cast %20 : vector<1x128x128xbf16> to vector<128x128xbf16>
    %c2_16 = arith.constant 2 : index
    %c0_17 = arith.constant 0 : index
    %c0_18 = arith.constant 0 : index
    %22 = vector.load %arg3[%c2_16, %c0_17, %c0_18] : memref<4x1x128xf32, #tpu.memory_space<vmem>>, vector<1x1x128xf32>
    %23 = vector.shape_cast %22 : vector<1x1x128xf32> to vector<1x128xf32>
    %cst_19 = arith.constant dense<0.000000e+00> : vector<256x128xf32>
    %24 = tpu.matmul %19, %21, %cst_19 {dimension_numbers = #tpu.dot_dimension_numbers<[1], [0], [0], [1], [0, 0, 1, 1], [], []>} : vector<256x128xbf16>, vector<128x128xbf16>, vector<256x128xf32> -> vector<256x128xf32>
    %25 = vector.broadcast %23 : vector<1x128xf32> to vector<256x128xf32>
    %26 = arith.addf %24, %25 : vector<256x128xf32>
    %cst_20 = arith.constant 0.000000e+00 : f32
    %27 = vector.broadcast %cst_20 : f32 to vector<256x128xf32>
    %28 = arith.maximumf %26, %27 : vector<256x128xf32>
    %29 = arith.truncf %28 : vector<256x128xf32> to vector<256x128xbf16>
    %c3 = arith.constant 3 : index
    %c0_21 = arith.constant 0 : index
    %c0_22 = arith.constant 0 : index
    %30 = vector.load %arg2[%c3, %c0_21, %c0_22] : memref<4x128x128xbf16, #tpu.memory_space<vmem>>, vector<1x128x128xbf16>
    %31 = vector.shape_cast %30 : vector<1x128x128xbf16> to vector<128x128xbf16>
    %c3_23 = arith.constant 3 : index
    %c0_24 = arith.constant 0 : index
    %c0_25 = arith.constant 0 : index
    %32 = vector.load %arg3[%c3_23, %c0_24, %c0_25] : memref<4x1x128xf32, #tpu.memory_space<vmem>>, vector<1x1x128xf32>
    %33 = vector.shape_cast %32 : vector<1x1x128xf32> to vector<1x128xf32>
    %cst_26 = arith.constant dense<0.000000e+00> : vector<256x128xf32>
    %34 = tpu.matmul %29, %31, %cst_26 {dimension_numbers = #tpu.dot_dimension_numbers<[1], [0], [0], [1], [0, 0, 1, 1], [], []>} : vector<256x128xbf16>, vector<128x128xbf16>, vector<256x128xf32> -> vector<256x128xf32>
    %35 = vector.broadcast %33 : vector<1x128xf32> to vector<256x128xf32>
    %36 = arith.addf %34, %35 : vector<256x128xf32>
    %c0_27 = arith.constant 0 : index
    %c0_28 = arith.constant 0 : index
    %37 = vector.load %arg4[%c0_27, %c0_28] : memref<256x128xf32, #tpu.memory_space<vmem>>, vector<256x128xf32>
    tpu.vector_store %arg4[%c0_27, %c0_28], %36 {strides = array<i32>} : memref<256x128xf32, #tpu.memory_space<vmem>>, vector<256x128xf32>,
    return
  }
  func.func @transform_0(%arg0: i32) -> (i32, i32) {
    %c0_i32 = arith.constant 0 : i32
    %c0_i32_0 = arith.constant 0 : i32
    return %arg0, %c0_i32 : i32, i32
  }
  func.func @transform_1(%arg0: i32) -> (i32, i32, i32) {
    %c0_i32 = arith.constant 0 : i32
    %c0_i32_0 = arith.constant 0 : i32
    %c0_i32_1 = arith.constant 0 : i32
    %c0_i32_2 = arith.constant 0 : i32
    return %c0_i32, %c0_i32_0, %c0_i32_1 : i32, i32, i32
  }
  func.func @transform_2(%arg0: i32) -> (i32, i32, i32) {
    %c0_i32 = arith.constant 0 : i32
    %c0_i32_0 = arith.constant 0 : i32
    %c0_i32_1 = arith.constant 0 : i32
    %c0_i32_2 = arith.constant 0 : i32
    return %c0_i32, %c0_i32_0, %c0_i32_1 : i32, i32, i32
  }
  func.func @transform_3(%arg0: i32) -> (i32, i32) {
    %c0_i32 = arith.constant 0 : i32
    %c0_i32_0 = arith.constant 0 : i32
    return %arg0, %c0_i32 : i32, i32
  }
}

</mosaic_0001>

<llo_original>
// kernel: _forward_impl.1
$region0: #{_forward_impl.1}
  #allocation0 [shape = 'u32[]', space=smem, size = 0x4, offset = 0x4, fixed_abs, tag = 'smem constant byte address 0x4 - core index']
  #allocation1 [shape = 'u32[144,128]{1,0:T(1,128)}', space=vmem, size = 0x12000, scoped, tag = 'internal scratch']
  %s0 = inlined_call_operand.vmem [shape: f32[256,64], index: 0, kind: input, shape index: {}]
  %s1 = inlined_call_operand.vmem [shape: bf16[4,128,128], index: 1, kind: input, shape index: {}]
  %s2 = inlined_call_operand.vmem [shape: f32[4,1,128], index: 2, kind: input, shape index: {}]
  %s3 = inlined_call_operand.vmem [shape: f32[256,128], index: 3, kind: output, shape index: {}]
  %s4 = sld [smem:[#allocation0]]
  $region22: #{_forward_impl.1} parent=0
    _
  %s6 = ssub.s32 1, %s4
  %s7 = scalar_select 0, %s6, %s4
  // Predicated region
  $region2: #{_forward_impl.1} parent=0 // pred_check
    _
  $region3: #{_forward_impl.1} parent=0 // pred_check_branch
    %9 = sbr.rel (0) target = $region5
  $region4: #{_forward_impl.1} parent=0 // pred_region
    _
  $region5: #{_forward_impl.1} parent=0 // pred_fallthru
    _
  // Predicated region
  $region6: #{_forward_impl.1} parent=0 // pred_check
    _
  $region7: #{_forward_impl.1} parent=0 // pred_check_branch
    %11 = sbr.rel (0) target = $region9
  $region8: #{_forward_impl.1} parent=0 // pred_region
    _
  $region9: #{_forward_impl.1} parent=0 // pred_fallthru
    _
  // Predicated region
  $region10: #{_forward_impl.1} parent=0 // pred_check
    _
  $region11: #{_forward_impl.1} parent=0 // pred_check_branch
    %13 = sbr.rel (0) target = $region13
  $region12: #{_forward_impl.1} parent=0 // pred_region
    _
  $region13: #{_forward_impl.1} parent=0 // pred_fallthru
    _
  %v15 = vld [vmem:[%s0] sm:$0xff]
  %v16 = vld [vmem:[%s0 + $0x8] sm:$0xff]
  %v17 = vld [vmem:[%s0 + $0x10] sm:$0xff]
  %v18 = vld [vmem:[%s0 + $0x18] sm:$0xff]
  %v19 = vld [vmem:[%s0 + $0x20] sm:$0xff]
  %v20 = vld [vmem:[%s0 + $0x28] sm:$0xff]
  %v21 = vld [vmem:[%s0 + $0x30] sm:$0xff]
  %v22 = vld [vmem:[%s0 + $0x38] sm:$0xff]
  %v23 = vld [vmem:[%s0 + $0x40] sm:$0xff]
  %v24 = vld [vmem:[%s0 + $0x48] sm:$0xff]
  %v25 = vld [vmem:[%s0 + $0x50] sm:$0xff]
  %v26 = vld [vmem:[%s0 + $0x58] sm:$0xff]
  %v27 = vld [vmem:[%s0 + $0x60] sm:$0xff]
  %v28 = vld [vmem:[%s0 + $0x68] sm:$0xff]
  %v29 = vld [vmem:[%s0 + $0x70] sm:$0xff]
  %v30 = vld [vmem:[%s0 + $0x78] sm:$0xff]
  %v31 = vld [vmem:[%s0 + $0x80] sm:$0xff]
  %v32 = vld [vmem:[%s0 + $0x88] sm:$0xff]
  %v33 = vld [vmem:[%s0 + $0x90] sm:$0xff]
  %v34 = vld [vmem:[%s0 + $0x98] sm:$0xff]
  %v35 = vld [vmem:[%s0 + $0xa0] sm:$0xff]
  %v36 = vld [vmem:[%s0 + $0xa8] sm:$0xff]
  %v37 = vld [vmem:[%s0 + $0xb0] sm:$0xff]
  %v38 = vld [vmem:[%s0 + $0xb8] sm:$0xff]
  %v39 = vld [vmem:[%s0 + $0xc0] sm:$0xff]
  %v40 = vld [vmem:[%s0 + $0xc8] sm:$0xff]
  %v41 = vld [vmem:[%s0 + $0xd0] sm:$0xff]
  %v42 = vld [vmem:[%s0 + $0xd8] sm:$0xff]
  %v43 = vld [vmem:[%s0 + $0xe0] sm:$0xff]
  %v44 = vld [vmem:[%s0 + $0xe8] sm:$0xff]
  %v45 = vld [vmem:[%s0 + $0xf0] sm:$0xff]
  %v46 = vld [vmem:[%s0 + $0xf8] sm:$0xff]
  %v47 = vpack.c.bf16 %v16, %v15
  %v48 = vpack.c.bf16 %v18, %v17
  %v49 = vpack.c.bf16 %v20, %v19
  %v50 = vpack.c.bf16 %v22, %v21
  %v51 = vpack.c.bf16 %v24, %v23
  %v52 = vpack.c.bf16 %v26, %v25
  %v53 = vpack.c.bf16 %v28, %v27
  %v54 = vpack.c.bf16 %v30, %v29
  %v55 = vpack.c.bf16 %v32, %v31
  %v56 = vpack.c.bf16 %v34, %v33
  %v57 = vpack.c.bf16 %v36, %v35
  %v58 = vpack.c.bf16 %v38, %v37
  %v59 = vpack.c.bf16 %v40, %v39
  %v60 = vpack.c.bf16 %v42, %v41
  %v61 = vpack.c.bf16 %v44, %v43
  %v62 = vpack.c.bf16 %v46, %v45
  %v63 = vld [vmem:[%s1] sm:$0xf]
  %v64 = vld [vmem:[%s1 + $0x4] sm:$0xf]
  %v65 = vld [vmem:[%s1 + $0x8] sm:$0xf]
  %v66 = vld [vmem:[%s1 + $0xc] sm:$0xf]
  %v67 = vld [vmem:[%s1 + $0x10] sm:$0xf]
  %v68 = vld [vmem:[%s1 + $0x14] sm:$0xf]
  %v69 = vld [vmem:[%s1 + $0x18] sm:$0xf]
  %v70 = vld [vmem:[%s1 + $0x1c] sm:$0xf]
  %v71 = vld [vmem:[%s2] sm:$0x1]
  %v73 = vlaneseq
  %v74 = vshrl.u32 %v73, 7
  %v75 = vsub.s32 0, %v74
  %v76 = vrot.slane %v71, %v75
  %v86 = vunpack.c.l.b16 %v63
  %v87 = vunpack.c.l.b16 %v64
  %v88 = vunpack.c.l.b16 %v65
  %v89 = vunpack.c.l.b16 %v66
  %v90 = vunpack.c.l.b16 %v67
  %v91 = vunpack.c.l.b16 %v68
  %v92 = vunpack.c.l.b16 %v69
  %v93 = vunpack.c.l.b16 %v70
  %v94 = vpack.c.b16 %v87, %v86
  %v95 = vpack.c.b16 %v89, %v88
  %v96 = vpack.c.b16 %v91, %v90
  %v97 = vpack.c.b16 %v93, %v92
  %vm102 = vcmask 523264
  %v104 = vsel %vm102, %v47, 0
  %v107 = vsel %vm102, %v48, 0
  %v110 = vsel %vm102, %v49, 0
  %v113 = vsel %vm102, %v50, 0
  %v116 = vsel %vm102, %v51, 0
  %v119 = vsel %vm102, %v52, 0
  %v122 = vsel %vm102, %v53, 0
  %v125 = vsel %vm102, %v54, 0
  %v128 = vsel %vm102, %v55, 0
  %v131 = vsel %vm102, %v56, 0
  %v134 = vsel %vm102, %v57, 0
  %v137 = vsel %vm102, %v58, 0
  %v140 = vsel %vm102, %v59, 0
  %v143 = vsel %vm102, %v60, 0
  %v146 = vsel %vm102, %v61, 0
  %v149 = vsel %vm102, %v62, 0
  %151 = vmatprep.subr.bf16.mxu0 0
  %152 = vmatpush1.bf16.msra.mxu0 %v94
  %153 = vmatprep.subr.bf16.mxu0 0
  %154 = vmatpush1.bf16.msra.mxu0 %v95
  %155 = vmatprep.subr.bf16.mxu0 0
  %156 = vmatpush1.bf16.msra.mxu0 %v96
  %157 = vmatprep.subr.bf16.mxu0 0
  %158 = vmatpush1.bf16.msra.mxu0 %v97
  %159 = vmatprep.subr.bf16.mxu0 0
  %160 = vmatpush1.bf16.msra.mxu0 0
  %161 = vmatprep.subr.bf16.mxu0 0
  %162 = vmatpush1.bf16.msra.mxu0 0
  %163 = vmatprep.subr.bf16.mxu0 0
  %164 = vmatpush1.bf16.msra.mxu0 0
  %165 = vmatprep.subr.bf16.mxu0 0
  %166 = vmatpush1.bf16.msra.mxu0 0
  %167 = vmatprep.subr.bf16.mxu0 0
  %168 = vmatpush1.bf16.msra.mxu0 0
  %169 = vmatprep.subr.bf16.mxu0 0
  %170 = vmatpush1.bf16.msra.mxu0 0
  %171 = vmatprep.subr.bf16.mxu0 0
  %172 = vmatpush1.bf16.msra.mxu0 0
  %173 = vmatprep.subr.bf16.mxu0 0
  %174 = vmatpush1.bf16.msra.mxu0 0
  %175 = vmatprep.subr.bf16.mxu0 0
  %176 = vmatpush1.bf16.msra.mxu0 0
  %177 = vmatprep.subr.bf16.mxu0 0
  %178 = vmatpush1.bf16.msra.mxu0 0
  %179 = vmatprep.subr.bf16.mxu0 0
  %180 = vmatpush1.bf16.msra.mxu0 0
  %181 = vmatprep.subr.bf16.mxu0 0
  %182 = vmatpush1.bf16.msra.mxu0 0
  %183 = vmatprep.mubr.bf16.mxu0 0
  %184 = vmatmul.mubr.bf16.gmra.mrb[0].mxu0 %v104
  %v185 = vpop.f32.mrb[0].mxu0
  %v186 = vadd.f32 %v76, %v185
  %v187 = vpop.f32.mrb[0].mxu0
  %v188 = vpop.f32.mrb[0].mxu0
  %v189 = vadd.f32 %v76, %v188
  %v190 = vpop.f32.mrb[0].mxu0
  %191 = vmatprep.mubr.bf16.mxu0 0
  %192 = vmatmul.mubr.bf16.gmra.mrb[0].mxu0 %v107
  %v193 = vpop.f32.mrb[0].mxu0
  %v194 = vadd.f32 %v76, %v193
  %v195 = vpop.f32.mrb[0].mxu0
  %v196 = vpop.f32.mrb[0].mxu0
  %v197 = vadd.f32 %v76, %v196
  %v198 = vpop.f32.mrb[0].mxu0
  %199 = vmatprep.mubr.bf16.mxu0 0
  %200 = vmatmul.mubr.bf16.gmra.mrb[0].mxu0 %v110
  %v201 = vpop.f32.mrb[0].mxu0
  %v202 = vadd.f32 %v76, %v201
  %v203 = vpop.f32.mrb[0].mxu0
  %v204 = vpop.f32.mrb[0].mxu0
  %v205 = vadd.f32 %v76, %v204
  %v206 = vpop.f32.mrb[0].mxu0
  %207 = vmatprep.mubr.bf16.mxu0 0
  %208 = vmatmul.mubr.bf16.gmra.mrb[0].mxu0 %v113
  %v209 = vpop.f32.mrb[0].mxu0
  %v210 = vadd.f32 %v76, %v209
  %v211 = vpop.f32.mrb[0].mxu0
  %v212 = vpop.f32.mrb[0].mxu0
  %v213 = vadd.f32 %v76, %v212
  %v214 = vpop.f32.mrb[0].mxu0
  %215 = vmatprep.mubr.bf16.mxu0 0
  %216 = vmatmul.mubr.bf16.gmra.mrb[0].mxu0 %v116
  %v217 = vpop.f32.mrb[0].mxu0
  %v218 = vadd.f32 %v76, %v217
  %v219 = vpop.f32.mrb[0].mxu0
  %v220 = vpop.f32.mrb[0].mxu0
  %v221 = vadd.f32 %v76, %v220
  %v222 = vpop.f32.mrb[0].mxu0
  %223 = vmatprep.mubr.bf16.mxu0 0
  %224 = vmatmul.mubr.bf16.gmra.mrb[0].mxu0 %v119
  %v225 = vpop.f32.mrb[0].mxu0
  %v226 = vadd.f32 %v76, %v225
  %v227 = vpop.f32.mrb[0].mxu0
  %v228 = vpop.f32.mrb[0].mxu0
  %v229 = vadd.f32 %v76, %v228
  %v230 = vpop.f32.mrb[0].mxu0
  %231 = vmatprep.mubr.bf16.mxu0 0
  %232 = vmatmul.mubr.bf16.gmra.mrb[0].mxu0 %v122
  %v233 = vpop.f32.mrb[0].mxu0
  %v234 = vadd.f32 %v76, %v233
  %v235 = vpop.f32.mrb[0].mxu0
  %v236 = vpop.f32.mrb[0].mxu0
  %v237 = vadd.f32 %v76, %v236
  %v238 = vpop.f32.mrb[0].mxu0
  %239 = vmatprep.mubr.bf16.mxu0 0
  %240 = vmatmul.mubr.bf16.gmra.mrb[0].mxu0 %v125
  %v241 = vpop.f32.mrb[0].mxu0
  %v242 = vadd.f32 %v76, %v241
  %v243 = vpop.f32.mrb[0].mxu0
  %v244 = vpop.f32.mrb[0].mxu0
  %v245 = vadd.f32 %v76, %v244
  %v246 = vpop.f32.mrb[0].mxu0
  %247 = vmatprep.mubr.bf16.mxu0 0
  %248 = vmatmul.mubr.bf16.gmra.mrb[0].mxu0 %v128
  %v249 = vpop.f32.mrb[0].mxu0
  %v250 = vadd.f32 %v76, %v249
  %v251 = vpop.f32.mrb[0].mxu0
  %v252 = vpop.f32.mrb[0].mxu0
  %v253 = vadd.f32 %v76, %v252
  %v254 = vpop.f32.mrb[0].mxu0
  %255 = vmatprep.mubr.bf16.mxu0 0
  %256 = vmatmul.mubr.bf16.gmra.mrb[0].mxu0 %v131
  %v257 = vpop.f32.mrb[0].mxu0
  %v258 = vadd.f32 %v76, %v257
  %v259 = vpop.f32.mrb[0].mxu0
  %v260 = vpop.f32.mrb[0].mxu0
  %v261 = vadd.f32 %v76, %v260
  %v262 = vpop.f32.mrb[0].mxu0
  %263 = vmatprep.mubr.bf16.mxu0 0
  %264 = vmatmul.mubr.bf16.gmra.mrb[0].mxu0 %v134
  %v265 = vpop.f32.mrb[0].mxu0
  %v266 = vadd.f32 %v76, %v265
  %v267 = vpop.f32.mrb[0].mxu0
  %v268 = vpop.f32.mrb[0].mxu0
  %v269 = vadd.f32 %v76, %v268
  %v270 = vpop.f32.mrb[0].mxu0
  %271 = vmatprep.mubr.bf16.mxu0 0
  %272 = vmatmul.mubr.bf16.gmra.mrb[0].mxu0 %v137
  %v273 = vpop.f32.mrb[0].mxu0
  %v274 = vadd.f32 %v76, %v273
  %v275 = vpop.f32.mrb[0].mxu0
  %v276 = vpop.f32.mrb[0].mxu0
  %v277 = vadd.f32 %v76, %v276
  %v278 = vpop.f32.mrb[0].mxu0
  %279 = vmatprep.mubr.bf16.mxu0 0
  %280 = vmatmul.mubr.bf16.gmra.mrb[0].mxu0 %v140
  %v281 = vpop.f32.mrb[0].mxu0
  %v282 = vadd.f32 %v76, %v281
  %v283 = vpop.f32.mrb[0].mxu0
  %v284 = vpop.f32.mrb[0].mxu0
  %v285 = vadd.f32 %v76, %v284
  %v286 = vpop.f32.mrb[0].mxu0
  %287 = vmatprep.mubr.bf16.mxu0 0
  %288 = vmatmul.mubr.bf16.gmra.mrb[0].mxu0 %v143
  %v289 = vpop.f32.mrb[0].mxu0
  %v290 = vadd.f32 %v76, %v289
  %v291 = vpop.f32.mrb[0].mxu0
  %v292 = vpop.f32.mrb[0].mxu0
  %v293 = vadd.f32 %v76, %v292
  %v294 = vpop.f32.mrb[0].mxu0
  %295 = vmatprep.mubr.bf16.mxu0 0
  %296 = vmatmul.mubr.bf16.gmra.mrb[0].mxu0 %v146
  %v297 = vpop.f32.mrb[0].mxu0
  %v298 = vadd.f32 %v76, %v297
  %v299 = vpop.f32.mrb[0].mxu0
  %v300 = vpop.f32.mrb[0].mxu0
  %v301 = vadd.f32 %v76, %v300
  %v302 = vpop.f32.mrb[0].mxu0
  %303 = vmatprep.mubr.bf16.mxu0 0
  %304 = vmatmul.mubr.bf16.gmra.mrb[0].mxu0 %v149
  %v305 = vpop.f32.mrb[0].mxu0
  %v306 = vadd.f32 %v76, %v305
  %v307 = vpop.f32.mrb[0].mxu0
  %v308 = vpop.f32.mrb[0].mxu0
  %v309 = vadd.f32 %v76, %v308
  %v310 = vpop.f32.mrb[0].mxu0
  %311 = vdwg.mxu0
  %v312 = vmax.f32 %v186, 0.0
  %v313 = vmax.f32 %v189, 0.0
  %v314 = vmax.f32 %v194, 0.0
  %v315 = vmax.f32 %v197, 0.0
  %v316 = vmax.f32 %v202, 0.0
  %v317 = vmax.f32 %v205, 0.0
  %v318 = vmax.f32 %v210, 0.0
  %v319 = vmax.f32 %v213, 0.0
  %v320 = vmax.f32 %v218, 0.0
  %v321 = vmax.f32 %v221, 0.0
  %v322 = vmax.f32 %v226, 0.0
  %v323 = vmax.f32 %v229, 0.0
  %v324 = vmax.f32 %v234, 0.0
  %v325 = vmax.f32 %v237, 0.0
  %v326 = vmax.f32 %v242, 0.0
  %v327 = vmax.f32 %v245, 0.0
  %v328 = vmax.f32 %v250, 0.0
  %v329 = vmax.f32 %v253, 0.0
  %v330 = vmax.f32 %v258, 0.0
  %v331 = vmax.f32 %v261, 0.0
  %v332 = vmax.f32 %v266, 0.0
  %v333 = vmax.f32 %v269, 0.0
  %v334 = vmax.f32 %v274, 0.0
  %v335 = vmax.f32 %v277, 0.0
  %v336 = vmax.f32 %v282, 0.0
  %v337 = vmax.f32 %v285, 0.0
  %v338 = vmax.f32 %v290, 0.0
  %v339 = vmax.f32 %v293, 0.0
  %v340 = vmax.f32 %v298, 0.0
  %v341 = vmax.f32 %v301, 0.0
  %v342 = vmax.f32 %v306, 0.0
  %v343 = vmax.f32 %v309, 0.0
  %v344 = vpack.c.bf16 %v313, %v312
  %v345 = vpack.c.bf16 %v315, %v314
  %v346 = vpack.c.bf16 %v317, %v316
  %v347 = vpack.c.bf16 %v319, %v318
  %v348 = vpack.c.bf16 %v321, %v320
  %v349 = vpack.c.bf16 %v323, %v322
  %v350 = vpack.c.bf16 %v325, %v324
  %v351 = vpack.c.bf16 %v327, %v326
  %v352 = vpack.c.bf16 %v329, %v328
  %v353 = vpack.c.bf16 %v331, %v330
  %v354 = vpack.c.bf16 %v333, %v332
  %v355 = vpack.c.bf16 %v335, %v334
  %v356 = vpack.c.bf16 %v337, %v336
  %v357 = vpack.c.bf16 %v339, %v338
  %v358 = vpack.c.bf16 %v341, %v340
  %v359 = vpack.c.bf16 %v343, %v342
  %s360 = scalar_lea.vmem %s1, 64
  %v361 = vld [vmem:[%s360] sm:$0xf]
  %v362 = vld [vmem:[%s360 + $0x4] sm:$0xf]
  %v363 = vld [vmem:[%s360 + $0x8] sm:$0xf]
  %v364 = vld [vmem:[%s360 + $0xc] sm:$0xf]
  %v365 = vld [vmem:[%s360 + $0x10] sm:$0xf]
  %v366 = vld [vmem:[%s360 + $0x14] sm:$0xf]
  %v367 = vld [vmem:[%s360 + $0x18] sm:$0xf]
  %v368 = vld [vmem:[%s360 + $0x1c] sm:$0xf]
  %v369 = vld [vmem:[%s360 + $0x20] sm:$0xf]
  %v370 = vld [vmem:[%s360 + $0x24] sm:$0xf]
  %v371 = vld [vmem:[%s360 + $0x28] sm:$0xf]
  %v372 = vld [vmem:[%s360 + $0x2c] sm:$0xf]
  %v373 = vld [vmem:[%s360 + $0x30] sm:$0xf]
  %v374 = vld [vmem:[%s360 + $0x34] sm:$0xf]
  %v375 = vld [vmem:[%s360 + $0x38] sm:$0xf]
  %v376 = vld [vmem:[%s360 + $0x3c] sm:$0xf]
  %s377 = scalar_lea.vmem %s2, 1
  %v378 = vld [vmem:[%s377] sm:$0x1]
  %v380 = vlaneseq
  %v381 = vshrl.u32 %v380, 7
  %v382 = vsub.s32 0, %v381
  %v383 = vrot.slane %v378, %v382
  %v401 = vunpack.c.l.b16 %v361
  %v402 = vunpack.c.l.b16 %v362
  %v403 = vunpack.c.l.b16 %v363
  %v404 = vunpack.c.l.b16 %v364
  %v405 = vunpack.c.l.b16 %v365
  %v406 = vunpack.c.l.b16 %v366
  %v407 = vunpack.c.l.b16 %v367
  %v408 = vunpack.c.l.b16 %v368
  %v409 = vunpack.c.l.b16 %v369
  %v410 = vunpack.c.l.b16 %v370
  %v411 = vunpack.c.l.b16 %v371
  %v412 = vunpack.c.l.b16 %v372
  %v413 = vunpack.c.l.b16 %v373
  %v414 = vunpack.c.l.b16 %v374
  %v415 = vunpack.c.l.b16 %v375
  %v416 = vunpack.c.l.b16 %v376
  %v417 = vpack.c.b16 %v402, %v401
  %v418 = vpack.c.b16 %v404, %v403
  %v419 = vpack.c.b16 %v406, %v405
  %v420 = vpack.c.b16 %v408, %v407
  %v421 = vpack.c.b16 %v410, %v409
  %v422 = vpack.c.b16 %v412, %v411
  %v423 = vpack.c.b16 %v414, %v413
  %v424 = vpack.c.b16 %v416, %v415
  %433 = vmatprep.subr.bf16.mxu0 0
  %434 = vmatpush1.bf16.msra.mxu0 %v417
  %435 = vmatprep.subr.bf16.mxu0 0
  %436 = vmatpush1.bf16.msra.mxu0 %v418
  %437 = vmatprep.subr.bf16.mxu0 0
  %438 = vmatpush1.bf16.msra.mxu0 %v419
  %439 = vmatprep.subr.bf16.mxu0 0
  %440 = vmatpush1.bf16.msra.mxu0 %v420
  %441 = vmatprep.subr.bf16.mxu0 0
  %442 = vmatpush1.bf16.msra.mxu0 %v421
  %443 = vmatprep.subr.bf16.mxu0 0
  %444 = vmatpush1.bf16.msra.mxu0 %v422
  %445 = vmatprep.subr.bf16.mxu0 0
  %446 = vmatpush1.bf16.msra.mxu0 %v423
  %447 = vmatprep.subr.bf16.mxu0 0
  %448 = vmatpush1.bf16.msra.mxu0 %v424
  %449 = vmatprep.subr.bf16.mxu0 0
  %450 = vmatpush1.bf16.msra.mxu0 0
  %451 = vmatprep.subr.bf16.mxu0 0
  %452 = vmatpush1.bf16.msra.mxu0 0
  %453 = vmatprep.subr.bf16.mxu0 0
  %454 = vmatpush1.bf16.msra.mxu0 0
  %455 = vmatprep.subr.bf16.mxu0 0
  %456 = vmatpush1.bf16.msra.mxu0 0
  %457 = vmatprep.subr.bf16.mxu0 0
  %458 = vmatpush1.bf16.msra.mxu0 0
  %459 = vmatprep.subr.bf16.mxu0 0
  %460 = vmatpush1.bf16.msra.mxu0 0
  %461 = vmatprep.subr.bf16.mxu0 0
  %462 = vmatpush1.bf16.msra.mxu0 0
  %463 = vmatprep.subr.bf16.mxu0 0
  %464 = vmatpush1.bf16.msra.mxu0 0
  %465 = vmatprep.mubr.bf16.mxu0 0
  %466 = vmatmul.mubr.bf16.gmra.mrb[0].mxu0 %v344
  %v467 = vpop.f32.mrb[0].mxu0
  %v468 = vadd.f32 %v383, %v467
  %v469 = vpop.f32.mrb[0].mxu0
  %v470 = vpop.f32.mrb[0].mxu0
  %v471 = vadd.f32 %v383, %v470
  %v472 = vpop.f32.mrb[0].mxu0
  %473 = vmatprep.mubr.bf16.mxu0 0
  %474 = vmatmul.mubr.bf16.gmra.mrb[0].mxu0 %v345
  %v475 = vpop.f32.mrb[0].mxu0
  %v476 = vadd.f32 %v383, %v475
  %v477 = vpop.f32.mrb[0].mxu0
  %v478 = vpop.f32.mrb[0].mxu0
  %v479 = vadd.f32 %v383, %v478
  %v480 = vpop.f32.mrb[0].mxu0
  %481 = vmatprep.mubr.bf16.mxu0 0
  %482 = vmatmul.mubr.bf16.gmra.mrb[0].mxu0 %v346
  %v483 = vpop.f32.mrb[0].mxu0
  %v484 = vadd.f32 %v383, %v483
  %v485 = vpop.f32.mrb[0].mxu0
  %v486 = vpop.f32.mrb[0].mxu0
  %v487 = vadd.f32 %v383, %v486
  %v488 = vpop.f32.mrb[0].mxu0
  %489 = vmatprep.mubr.bf16.mxu0 0
  %490 = vmatmul.mubr.bf16.gmra.mrb[0].mxu0 %v347
  %v491 = vpop.f32.mrb[0].mxu0
  %v492 = vadd.f32 %v383, %v491
  %v493 = vpop.f32.mrb[0].mxu0
  %v494 = vpop.f32.mrb[0].mxu0
  %v495 = vadd.f32 %v383, %v494
  %v496 = vpop.f32.mrb[0].mxu0
  %497 = vmatprep.mubr.bf16.mxu0 0
  %498 = vmatmul.mubr.bf16.gmra.mrb[0].mxu0 %v348
  %v499 = vpop.f32.mrb[0].mxu0
  %v500 = vadd.f32 %v383, %v499
  %v501 = vpop.f32.mrb[0].mxu0
  %v502 = vpop.f32.mrb[0].mxu0
  %v503 = vadd.f32 %v383, %v502
  %v504 = vpop.f32.mrb[0].mxu0
  %505 = vmatprep.mubr.bf16.mxu0 0
  %506 = vmatmul.mubr.bf16.gmra.mrb[0].mxu0 %v349
  %v507 = vpop.f32.mrb[0].mxu0
  %v508 = vadd.f32 %v383, %v507
  %v509 = vpop.f32.mrb[0].mxu0
  %v510 = vpop.f32.mrb[0].mxu0
  %v511 = vadd.f32 %v383, %v510
  %v512 = vpop.f32.mrb[0].mxu0
  %513 = vmatprep.mubr.bf16.mxu0 0
  %514 = vmatmul.mubr.bf16.gmra.mrb[0].mxu0 %v350
  %v515 = vpop.f32.mrb[0].mxu0
  %v516 = vadd.f32 %v383, %v515
  %v517 = vpop.f32.mrb[0].mxu0
  %v518 = vpop.f32.mrb[0].mxu0
  %v519 = vadd.f32 %v383, %v518
  %v520 = vpop.f32.mrb[0].mxu0
  %521 = vmatprep.mubr.bf16.mxu0 0
  %522 = vmatmul.mubr.bf16.gmra.mrb[0].mxu0 %v351
  %v523 = vpop.f32.mrb[0].mxu0
  %v524 = vadd.f32 %v383, %v523
  %v525 = vpop.f32.mrb[0].mxu0
  %v526 = vpop.f32.mrb[0].mxu0
  %v527 = vadd.f32 %v383, %v526
  %v528 = vpop.f32.mrb[0].mxu0
  %529 = vmatprep.mubr.bf16.mxu0 0
  %530 = vmatmul.mubr.bf16.gmra.mrb[0].mxu0 %v352
  %v531 = vpop.f32.mrb[0].mxu0
  %v532 = vadd.f32 %v383, %v531
  %v533 = vpop.f32.mrb[0].mxu0
  %v534 = vpop.f32.mrb[0].mxu0
  %v535 = vadd.f32 %v383, %v534
  %v536 = vpop.f32.mrb[0].mxu0
  %537 = vmatprep.mubr.bf16.mxu0 0
  %538 = vmatmul.mubr.bf16.gmra.mrb[0].mxu0 %v353
  %v539 = vpop.f32.mrb[0].mxu0
  %v540 = vadd.f32 %v383, %v539
  %v541 = vpop.f32.mrb[0].mxu0
  %v542 = vpop.f32.mrb[0].mxu0
  %v543 = vadd.f32 %v383, %v542
  %v544 = vpop.f32.mrb[0].mxu0
  %545 = vmatprep.mubr.bf16.mxu0 0
  %546 = vmatmul.mubr.bf16.gmra.mrb[0].mxu0 %v354
  %v547 = vpop.f32.mrb[0].mxu0
  %v548 = vadd.f32 %v383, %v547
  %v549 = vpop.f32.mrb[0].mxu0
  %v550 = vpop.f32.mrb[0].mxu0
  %v551 = vadd.f32 %v383, %v550
  %v552 = vpop.f32.mrb[0].mxu0
  %553 = vmatprep.mubr.bf16.mxu0 0
  %554 = vmatmul.mubr.bf16.gmra.mrb[0].mxu0 %v355
  %v555 = vpop.f32.mrb[0].mxu0
  %v556 = vadd.f32 %v383, %v555
  %v557 = vpop.f32.mrb[0].mxu0
  %v558 = vpop.f32.mrb[0].mxu0
  %v559 = vadd.f32 %v383, %v558
  %v560 = vpop.f32.mrb[0].mxu0
  %561 = vmatprep.mubr.bf16.mxu0 0
  %562 = vmatmul.mubr.bf16.gmra.mrb[0].mxu0 %v356
  %v563 = vpop.f32.mrb[0].mxu0
  %v564 = vadd.f32 %v383, %v563
  %v565 = vpop.f32.mrb[0].mxu0
  %v566 = vpop.f32.mrb[0].mxu0
  %v567 = vadd.f32 %v383, %v566
  %v568 = vpop.f32.mrb[0].mxu0
  %569 = vmatprep.mubr.bf16.mxu0 0
  %570 = vmatmul.mubr.bf16.gmra.mrb[0].mxu0 %v357
  %v571 = vpop.f32.mrb[0].mxu0
  %v572 = vadd.f32 %v383, %v571
  %v573 = vpop.f32.mrb[0].mxu0
  %v574 = vpop.f32.mrb[0].mxu0
  %v575 = vadd.f32 %v383, %v574
  %v576 = vpop.f32.mrb[0].mxu0
  %577 = vmatprep.mubr.bf16.mxu0 0
  %578 = vmatmul.mubr.bf16.gmra.mrb[0].mxu0 %v358
  %v579 = vpop.f32.mrb[0].mxu0
  %v580 = vadd.f32 %v383, %v579
  %v581 = vpop.f32.mrb[0].mxu0
  %v582 = vpop.f32.mrb[0].mxu0
  %v583 = vadd.f32 %v383, %v582
  %v584 = vpop.f32.mrb[0].mxu0
  %585 = vmatprep.mubr.bf16.mxu0 0
  %586 = vmatmul.mubr.bf16.gmra.mrb[0].mxu0 %v359
  %v587 = vpop.f32.mrb[0].mxu0
  %v588 = vadd.f32 %v383, %v587
  %v589 = vpop.f32.mrb[0].mxu0
  %v590 = vpop.f32.mrb[0].mxu0
  %v591 = vadd.f32 %v383, %v590
  %v592 = vpop.f32.mrb[0].mxu0
  %593 = vdwg.mxu0
  %v594 = vpack.c.bf16 %v471, %v468
  %v595 = vpack.c.bf16 %v479, %v476
  %v596 = vpack.c.bf16 %v487, %v484
  %v597 = vpack.c.bf16 %v495, %v492
  %v598 = vpack.c.bf16 %v503, %v500
  %v599 = vpack.c.bf16 %v511, %v508
  %v600 = vpack.c.bf16 %v519, %v516
  %v601 = vpack.c.bf16 %v527, %v524
  %v602 = vpack.c.bf16 %v535, %v532
  %v603 = vpack.c.bf16 %v543, %v540
  %v604 = vpack.c.bf16 %v551, %v548
  %v605 = vpack.c.bf16 %v559, %v556
  %v606 = vpack.c.bf16 %v567, %v564
  %v607 = vpack.c.bf16 %v575, %v572
  %v608 = vpack.c.bf16 %v583, %v580
  %v609 = vpack.c.bf16 %v591, %v588
  %s610 = scalar_lea.vmem %s1, 128
  %v611 = vld [vmem:[%s610] sm:$0xf]
  %v612 = vld [vmem:[%s610 + $0x4] sm:$0xf]
  %v613 = vld [vmem:[%s610 + $0x8] sm:$0xf]
  %v614 = vld [vmem:[%s610 + $0xc] sm:$0xf]
  %v615 = vld [vmem:[%s610 + $0x10] sm:$0xf]
  %v616 = vld [vmem:[%s610 + $0x14] sm:$0xf]
  %v617 = vld [vmem:[%s610 + $0x18] sm:$0xf]
  %v618 = vld [vmem:[%s610 + $0x1c] sm:$0xf]
  %v619 = vld [vmem:[%s610 + $0x20] sm:$0xf]
  %v620 = vld [vmem:[%s610 + $0x24] sm:$0xf]
  %v621 = vld [vmem:[%s610 + $0x28] sm:$0xf]
  %v622 = vld [vmem:[%s610 + $0x2c] sm:$0xf]
  %v623 = vld [vmem:[%s610 + $0x30] sm:$0xf]
  %v624 = vld [vmem:[%s610 + $0x34] sm:$0xf]
  %v625 = vld [vmem:[%s610 + $0x38] sm:$0xf]
  %v626 = vld [vmem:[%s610 + $0x3c] sm:$0xf]
  %s627 = scalar_lea.vmem %s2, 2
  %v628 = vld [vmem:[%s627] sm:$0x1]
  %v630 = vlaneseq
  %v631 = vshrl.u32 %v630, 7
  %v632 = vsub.s32 0, %v631
  %v633 = vrot.slane %v628, %v632
  %v651 = vunpack.c.l.b16 %v611
  %v652 = vunpack.c.l.b16 %v612
  %v653 = vunpack.c.l.b16 %v613
  %v654 = vunpack.c.l.b16 %v614
  %v655 = vunpack.c.l.b16 %v615
  %v656 = vunpack.c.l.b16 %v616
  %v657 = vunpack.c.l.b16 %v617
  %v658 = vunpack.c.l.b16 %v618
  %v659 = vunpack.c.l.b16 %v619
  %v660 = vunpack.c.l.b16 %v620
  %v661 = vunpack.c.l.b16 %v621
  %v662 = vunpack.c.l.b16 %v622
  %v663 = vunpack.c.l.b16 %v623
  %v664 = vunpack.c.l.b16 %v624
  %v665 = vunpack.c.l.b16 %v625
  %v666 = vunpack.c.l.b16 %v626
  %v667 = vpack.c.b16 %v652, %v651
  %v668 = vpack.c.b16 %v654, %v653
  %v669 = vpack.c.b16 %v656, %v655
  %v670 = vpack.c.b16 %v658, %v657
  %v671 = vpack.c.b16 %v660, %v659
  %v672 = vpack.c.b16 %v662, %v661
  %v673 = vpack.c.b16 %v664, %v663
  %v674 = vpack.c.b16 %v666, %v665
  %683 = vmatprep.subr.bf16.mxu0 0
  %684 = vmatpush1.bf16.msra.mxu0 %v667
  %685 = vmatprep.subr.bf16.mxu0 0
  %686 = vmatpush1.bf16.msra.mxu0 %v668
  %687 = vmatprep.subr.bf16.mxu0 0
  %688 = vmatpush1.bf16.msra.mxu0 %v669
  %689 = vmatprep.subr.bf16.mxu0 0
  %690 = vmatpush1.bf16.msra.mxu0 %v670
  %691 = vmatprep.subr.bf16.mxu0 0
  %692 = vmatpush1.bf16.msra.mxu0 %v671
  %693 = vmatprep.subr.bf16.mxu0 0
  %694 = vmatpush1.bf16.msra.mxu0 %v672
  %695 = vmatprep.subr.bf16.mxu0 0
  %696 = vmatpush1.bf16.msra.mxu0 %v673
  %697 = vmatprep.subr.bf16.mxu0 0
  %698 = vmatpush1.bf16.msra.mxu0 %v674
  %699 = vmatprep.subr.bf16.mxu0 0
  %700 = vmatpush1.bf16.msra.mxu0 0
  %701 = vmatprep.subr.bf16.mxu0 0
  %702 = vmatpush1.bf16.msra.mxu0 0
  %703 = vmatprep.subr.bf16.mxu0 0
  %704 = vmatpush1.bf16.msra.mxu0 0
  %705 = vmatprep.subr.bf16.mxu0 0
  %706 = vmatpush1.bf16.msra.mxu0 0
  %707 = vmatprep.subr.bf16.mxu0 0
  %708 = vmatpush1.bf16.msra.mxu0 0
  %709 = vmatprep.subr.bf16.mxu0 0
  %710 = vmatpush1.bf16.msra.mxu0 0
  %711 = vmatprep.subr.bf16.mxu0 0
  %712 = vmatpush1.bf16.msra.mxu0 0
  %713 = vmatprep.subr.bf16.mxu0 0
  %714 = vmatpush1.bf16.msra.mxu0 0
  %715 = vmatprep.mubr.bf16.mxu0 0
  %716 = vmatmul.mubr.bf16.gmra.mrb[0].mxu0 %v594
  %v717 = vpop.f32.mrb[0].mxu0
  %v718 = vadd.f32 %v633, %v717
  %v719 = vpop.f32.mrb[0].mxu0
  %v720 = vpop.f32.mrb[0].mxu0
  %v721 = vadd.f32 %v633, %v720
  %v722 = vpop.f32.mrb[0].mxu0
  %723 = vmatprep.mubr.bf16.mxu0 0
  %724 = vmatmul.mubr.bf16.gmra.mrb[0].mxu0 %v595
  %v725 = vpop.f32.mrb[0].mxu0
  %v726 = vadd.f32 %v633, %v725
  %v727 = vpop.f32.mrb[0].mxu0
  %v728 = vpop.f32.mrb[0].mxu0
  %v729 = vadd.f32 %v633, %v728
  %v730 = vpop.f32.mrb[0].mxu0
  %731 = vmatprep.mubr.bf16.mxu0 0
  %732 = vmatmul.mubr.bf16.gmra.mrb[0].mxu0 %v596
  %v733 = vpop.f32.mrb[0].mxu0
  %v734 = vadd.f32 %v633, %v733
  %v735 = vpop.f32.mrb[0].mxu0
  %v736 = vpop.f32.mrb[0].mxu0
  %v737 = vadd.f32 %v633, %v736
  %v738 = vpop.f32.mrb[0].mxu0
  %739 = vmatprep.mubr.bf16.mxu0 0
  %740 = vmatmul.mubr.bf16.gmra.mrb[0].mxu0 %v597
  %v741 = vpop.f32.mrb[0].mxu0
  %v742 = vadd.f32 %v633, %v741
  %v743 = vpop.f32.mrb[0].mxu0
  %v744 = vpop.f32.mrb[0].mxu0
  %v745 = vadd.f32 %v633, %v744
  %v746 = vpop.f32.mrb[0].mxu0
  %747 = vmatprep.mubr.bf16.mxu0 0
  %748 = vmatmul.mubr.bf16.gmra.mrb[0].mxu0 %v598
  %v749 = vpop.f32.mrb[0].mxu0
  %v750 = vadd.f32 %v633, %v749
  %v751 = vpop.f32.mrb[0].mxu0
  %v752 = vpop.f32.mrb[0].mxu0
  %v753 = vadd.f32 %v633, %v752
  %v754 = vpop.f32.mrb[0].mxu0
  %755 = vmatprep.mubr.bf16.mxu0 0
  %756 = vmatmul.mubr.bf16.gmra.mrb[0].mxu0 %v599
  %v757 = vpop.f32.mrb[0].mxu0
  %v758 = vadd.f32 %v633, %v757
  %v759 = vpop.f32.mrb[0].mxu0
  %v760 = vpop.f32.mrb[0].mxu0
  %v761 = vadd.f32 %v633, %v760
  %v762 = vpop.f32.mrb[0].mxu0
  %763 = vmatprep.mubr.bf16.mxu0 0
  %764 = vmatmul.mubr.bf16.gmra.mrb[0].mxu0 %v600
  %v765 = vpop.f32.mrb[0].mxu0
  %v766 = vadd.f32 %v633, %v765
  %v767 = vpop.f32.mrb[0].mxu0
  %v768 = vpop.f32.mrb[0].mxu0
  %v769 = vadd.f32 %v633, %v768
  %v770 = vpop.f32.mrb[0].mxu0
  %771 = vmatprep.mubr.bf16.mxu0 0
  %772 = vmatmul.mubr.bf16.gmra.mrb[0].mxu0 %v601
  %v773 = vpop.f32.mrb[0].mxu0
  %v774 = vadd.f32 %v633, %v773
  %v775 = vpop.f32.mrb[0].mxu0
  %v776 = vpop.f32.mrb[0].mxu0
  %v777 = vadd.f32 %v633, %v776
  %v778 = vpop.f32.mrb[0].mxu0
  %779 = vmatprep.mubr.bf16.mxu0 0
  %780 = vmatmul.mubr.bf16.gmra.mrb[0].mxu0 %v602
  %v781 = vpop.f32.mrb[0].mxu0
  %v782 = vadd.f32 %v633, %v781
  %v783 = vpop.f32.mrb[0].mxu0
  %v784 = vpop.f32.mrb[0].mxu0
  %v785 = vadd.f32 %v633, %v784
  %v786 = vpop.f32.mrb[0].mxu0
  %787 = vmatprep.mubr.bf16.mxu0 0
  %788 = vmatmul.mubr.bf16.gmra.mrb[0].mxu0 %v603
  %v789 = vpop.f32.mrb[0].mxu0
  %v790 = vadd.f32 %v633, %v789
  %v791 = vpop.f32.mrb[0].mxu0
  %v792 = vpop.f32.mrb[0].mxu0
  %v793 = vadd.f32 %v633, %v792
  %v794 = vpop.f32.mrb[0].mxu0
  %795 = vmatprep.mubr.bf16.mxu0 0
  %796 = vmatmul.mubr.bf16.gmra.mrb[0].mxu0 %v604
  %v797 = vpop.f32.mrb[0].mxu0
  %v798 = vadd.f32 %v633, %v797
  %v799 = vpop.f32.mrb[0].mxu0
  %v800 = vpop.f32.mrb[0].mxu0
  %v801 = vadd.f32 %v633, %v800
  %v802 = vpop.f32.mrb[0].mxu0
  %803 = vmatprep.mubr.bf16.mxu0 0
  %804 = vmatmul.mubr.bf16.gmra.mrb[0].mxu0 %v605
  %v805 = vpop.f32.mrb[0].mxu0
  %v806 = vadd.f32 %v633, %v805
  %v807 = vpop.f32.mrb[0].mxu0
  %v808 = vpop.f32.mrb[0].mxu0
  %v809 = vadd.f32 %v633, %v808
  %v810 = vpop.f32.mrb[0].mxu0
  %811 = vmatprep.mubr.bf16.mxu0 0
  %812 = vmatmul.mubr.bf16.gmra.mrb[0].mxu0 %v606
  %v813 = vpop.f32.mrb[0].mxu0
  %v814 = vadd.f32 %v633, %v813
  %v815 = vpop.f32.mrb[0].mxu0
  %v816 = vpop.f32.mrb[0].mxu0
  %v817 = vadd.f32 %v633, %v816
  %v818 = vpop.f32.mrb[0].mxu0
  %819 = vmatprep.mubr.bf16.mxu0 0
  %820 = vmatmul.mubr.bf16.gmra.mrb[0].mxu0 %v607
  %v821 = vpop.f32.mrb[0].mxu0
  %v822 = vadd.f32 %v633, %v821
  %v823 = vpop.f32.mrb[0].mxu0
  %v824 = vpop.f32.mrb[0].mxu0
  %v825 = vadd.f32 %v633, %v824
  %v826 = vpop.f32.mrb[0].mxu0
  %827 = vmatprep.mubr.bf16.mxu0 0
  %828 = vmatmul.mubr.bf16.gmra.mrb[0].mxu0 %v608
  %v829 = vpop.f32.mrb[0].mxu0
  %v830 = vadd.f32 %v633, %v829
  %v831 = vpop.f32.mrb[0].mxu0
  %v832 = vpop.f32.mrb[0].mxu0
  %v833 = vadd.f32 %v633, %v832
  %v834 = vpop.f32.mrb[0].mxu0
  %835 = vmatprep.mubr.bf16.mxu0 0
  %836 = vmatmul.mubr.bf16.gmra.mrb[0].mxu0 %v609
  %v837 = vpop.f32.mrb[0].mxu0
  %v838 = vadd.f32 %v633, %v837
  %v839 = vpop.f32.mrb[0].mxu0
  %v840 = vpop.f32.mrb[0].mxu0
  %v841 = vadd.f32 %v633, %v840
  %v842 = vpop.f32.mrb[0].mxu0
  %843 = vdwg.mxu0
  %v844 = vmax.f32 %v718, 0.0
  %v845 = vmax.f32 %v721, 0.0
  %v846 = vmax.f32 %v726, 0.0
  %v847 = vmax.f32 %v729, 0.0
  %v848 = vmax.f32 %v734, 0.0
  %v849 = vmax.f32 %v737, 0.0
  %v850 = vmax.f32 %v742, 0.0
  %v851 = vmax.f32 %v745, 0.0
  %v852 = vmax.f32 %v750, 0.0
  %v853 = vmax.f32 %v753, 0.0
  %v854 = vmax.f32 %v758, 0.0
  %v855 = vmax.f32 %v761, 0.0
  %v856 = vmax.f32 %v766, 0.0
  %v857 = vmax.f32 %v769, 0.0
  %v858 = vmax.f32 %v774, 0.0
  %v859 = vmax.f32 %v777, 0.0
  %v860 = vmax.f32 %v782, 0.0
  %v861 = vmax.f32 %v785, 0.0
  %v862 = vmax.f32 %v790, 0.0
  %v863 = vmax.f32 %v793, 0.0
  %v864 = vmax.f32 %v798, 0.0
  %v865 = vmax.f32 %v801, 0.0
  %v866 = vmax.f32 %v806, 0.0
  %v867 = vmax.f32 %v809, 0.0
  %v868 = vmax.f32 %v814, 0.0
  %v869 = vmax.f32 %v817, 0.0
  %v870 = vmax.f32 %v822, 0.0
  %v871 = vmax.f32 %v825, 0.0
  %v872 = vmax.f32 %v830, 0.0
  %v873 = vmax.f32 %v833, 0.0
  %v874 = vmax.f32 %v838, 0.0
  %v875 = vmax.f32 %v841, 0.0
  %v876 = vpack.c.bf16 %v845, %v844
  %v877 = vpack.c.bf16 %v847, %v846
  %v878 = vpack.c.bf16 %v849, %v848
  %v879 = vpack.c.bf16 %v851, %v850
  %v880 = vpack.c.bf16 %v853, %v852
  %v881 = vpack.c.bf16 %v855, %v854
  %v882 = vpack.c.bf16 %v857, %v856
  %v883 = vpack.c.bf16 %v859, %v858
  %v884 = vpack.c.bf16 %v861, %v860
  %v885 = vpack.c.bf16 %v863, %v862
  %v886 = vpack.c.bf16 %v865, %v864
  %v887 = vpack.c.bf16 %v867, %v866
  %v888 = vpack.c.bf16 %v869, %v868
  %v889 = vpack.c.bf16 %v871, %v870
  %v890 = vpack.c.bf16 %v873, %v872
  %v891 = vpack.c.bf16 %v875, %v874
  %s892 = scalar_lea.vmem %s1, 192
  %v893 = vld [vmem:[%s892] sm:$0xf]
  %v894 = vld [vmem:[%s892 + $0x4] sm:$0xf]
  %v895 = vld [vmem:[%s892 + $0x8] sm:$0xf]
  %v896 = vld [vmem:[%s892 + $0xc] sm:$0xf]
  %v897 = vld [vmem:[%s892 + $0x10] sm:$0xf]
  %v898 = vld [vmem:[%s892 + $0x14] sm:$0xf]
  %v899 = vld [vmem:[%s892 + $0x18] sm:$0xf]
  %v900 = vld [vmem:[%s892 + $0x1c] sm:$0xf]
  %v901 = vld [vmem:[%s892 + $0x20] sm:$0xf]
  %v902 = vld [vmem:[%s892 + $0x24] sm:$0xf]
  %v903 = vld [vmem:[%s892 + $0x28] sm:$0xf]
  %v904 = vld [vmem:[%s892 + $0x2c] sm:$0xf]
  %v905 = vld [vmem:[%s892 + $0x30] sm:$0xf]
  %v906 = vld [vmem:[%s892 + $0x34] sm:$0xf]
  %v907 = vld [vmem:[%s892 + $0x38] sm:$0xf]
  %v908 = vld [vmem:[%s892 + $0x3c] sm:$0xf]
  %s909 = scalar_lea.vmem %s2, 3
  %v910 = vld [vmem:[%s909] sm:$0x1]
  %v912 = vlaneseq
  %v913 = vshrl.u32 %v912, 7
  %v914 = vsub.s32 0, %v913
  %v915 = vrot.slane %v910, %v914
  %v933 = vunpack.c.l.b16 %v893
  %v934 = vunpack.c.l.b16 %v894
  %v935 = vunpack.c.l.b16 %v895
  %v936 = vunpack.c.l.b16 %v896
  %v937 = vunpack.c.l.b16 %v897
  %v938 = vunpack.c.l.b16 %v898
  %v939 = vunpack.c.l.b16 %v899
  %v940 = vunpack.c.l.b16 %v900
  %v941 = vunpack.c.l.b16 %v901
  %v942 = vunpack.c.l.b16 %v902
  %v943 = vunpack.c.l.b16 %v903
  %v944 = vunpack.c.l.b16 %v904
  %v945 = vunpack.c.l.b16 %v905
  %v946 = vunpack.c.l.b16 %v906
  %v947 = vunpack.c.l.b16 %v907
  %v948 = vunpack.c.l.b16 %v908
  %v949 = vpack.c.b16 %v934, %v933
  %v950 = vpack.c.b16 %v936, %v935
  %v951 = vpack.c.b16 %v938, %v937
  %v952 = vpack.c.b16 %v940, %v939
  %v953 = vpack.c.b16 %v942, %v941
  %v954 = vpack.c.b16 %v944, %v943
  %v955 = vpack.c.b16 %v946, %v945
  %v956 = vpack.c.b16 %v948, %v947
  %965 = vmatprep.subr.bf16.mxu0 0
  %966 = vmatpush1.bf16.msra.mxu0 %v949
  %967 = vmatprep.subr.bf16.mxu0 0
  %968 = vmatpush1.bf16.msra.mxu0 %v950
  %969 = vmatprep.subr.bf16.mxu0 0
  %970 = vmatpush1.bf16.msra.mxu0 %v951
  %971 = vmatprep.subr.bf16.mxu0 0
  %972 = vmatpush1.bf16.msra.mxu0 %v952
  %973 = vmatprep.subr.bf16.mxu0 0
  %974 = vmatpush1.bf16.msra.mxu0 %v953
  %975 = vmatprep.subr.bf16.mxu0 0
  %976 = vmatpush1.bf16.msra.mxu0 %v954
  %977 = vmatprep.subr.bf16.mxu0 0
  %978 = vmatpush1.bf16.msra.mxu0 %v955
  %979 = vmatprep.subr.bf16.mxu0 0
  %980 = vmatpush1.bf16.msra.mxu0 %v956
  %981 = vmatprep.subr.bf16.mxu0 0
  %982 = vmatpush1.bf16.msra.mxu0 0
  %983 = vmatprep.subr.bf16.mxu0 0
  %984 = vmatpush1.bf16.msra.mxu0 0
  %985 = vmatprep.subr.bf16.mxu0 0
  %986 = vmatpush1.bf16.msra.mxu0 0
  %987 = vmatprep.subr.bf16.mxu0 0
  %988 = vmatpush1.bf16.msra.mxu0 0
  %989 = vmatprep.subr.bf16.mxu0 0
  %990 = vmatpush1.bf16.msra.mxu0 0
  %991 = vmatprep.subr.bf16.mxu0 0
  %992 = vmatpush1.bf16.msra.mxu0 0
  %993 = vmatprep.subr.bf16.mxu0 0
  %994 = vmatpush1.bf16.msra.mxu0 0
  %995 = vmatprep.subr.bf16.mxu0 0
  %996 = vmatpush1.bf16.msra.mxu0 0
  %997 = vmatprep.mubr.bf16.mxu0 0
  %998 = vmatmul.mubr.bf16.gmra.mrb[0].mxu0 %v876
  %v999 = vpop.f32.mrb[0].mxu0
  %v1000 = vadd.f32 %v915, %v999
  %v1001 = vpop.f32.mrb[0].mxu0
  %v1002 = vpop.f32.mrb[0].mxu0
  %v1003 = vadd.f32 %v915, %v1002
  %v1004 = vpop.f32.mrb[0].mxu0
  %1005 = vmatprep.mubr.bf16.mxu0 0
  %1006 = vmatmul.mubr.bf16.gmra.mrb[0].mxu0 %v877
  %v1007 = vpop.f32.mrb[0].mxu0
  %v1008 = vadd.f32 %v915, %v1007
  %v1009 = vpop.f32.mrb[0].mxu0
  %v1010 = vpop.f32.mrb[0].mxu0
  %v1011 = vadd.f32 %v915, %v1010
  %v1012 = vpop.f32.mrb[0].mxu0
  %1013 = vmatprep.mubr.bf16.mxu0 0
  %1014 = vmatmul.mubr.bf16.gmra.mrb[0].mxu0 %v878
  %v1015 = vpop.f32.mrb[0].mxu0
  %v1016 = vadd.f32 %v915, %v1015
  %v1017 = vpop.f32.mrb[0].mxu0
  %v1018 = vpop.f32.mrb[0].mxu0
  %v1019 = vadd.f32 %v915, %v1018
  %v1020 = vpop.f32.mrb[0].mxu0
  %1021 = vmatprep.mubr.bf16.mxu0 0
  %1022 = vmatmul.mubr.bf16.gmra.mrb[0].mxu0 %v879
  %v1023 = vpop.f32.mrb[0].mxu0
  %v1024 = vadd.f32 %v915, %v1023
  %v1025 = vpop.f32.mrb[0].mxu0
  %v1026 = vpop.f32.mrb[0].mxu0
  %v1027 = vadd.f32 %v915, %v1026
  %v1028 = vpop.f32.mrb[0].mxu0
  %1029 = vmatprep.mubr.bf16.mxu0 0
  %1030 = vmatmul.mubr.bf16.gmra.mrb[0].mxu0 %v880
  %v1031 = vpop.f32.mrb[0].mxu0
  %v1032 = vadd.f32 %v915, %v1031
  %v1033 = vpop.f32.mrb[0].mxu0
  %v1034 = vpop.f32.mrb[0].mxu0
  %v1035 = vadd.f32 %v915, %v1034
  %v1036 = vpop.f32.mrb[0].mxu0
  %1037 = vmatprep.mubr.bf16.mxu0 0
  %1038 = vmatmul.mubr.bf16.gmra.mrb[0].mxu0 %v881
  %v1039 = vpop.f32.mrb[0].mxu0
  %v1040 = vadd.f32 %v915, %v1039
  %v1041 = vpop.f32.mrb[0].mxu0
  %v1042 = vpop.f32.mrb[0].mxu0
  %v1043 = vadd.f32 %v915, %v1042
  %v1044 = vpop.f32.mrb[0].mxu0
  %1045 = vmatprep.mubr.bf16.mxu0 0
  %1046 = vmatmul.mubr.bf16.gmra.mrb[0].mxu0 %v882
  %v1047 = vpop.f32.mrb[0].mxu0
  %v1048 = vadd.f32 %v915, %v1047
  %v1049 = vpop.f32.mrb[0].mxu0
  %v1050 = vpop.f32.mrb[0].mxu0
  %v1051 = vadd.f32 %v915, %v1050
  %v1052 = vpop.f32.mrb[0].mxu0
  %1053 = vmatprep.mubr.bf16.mxu0 0
  %1054 = vmatmul.mubr.bf16.gmra.mrb[0].mxu0 %v883
  %v1055 = vpop.f32.mrb[0].mxu0
  %v1056 = vadd.f32 %v915, %v1055
  %v1057 = vpop.f32.mrb[0].mxu0
  %v1058 = vpop.f32.mrb[0].mxu0
  %v1059 = vadd.f32 %v915, %v1058
  %v1060 = vpop.f32.mrb[0].mxu0
  %1061 = vmatprep.mubr.bf16.mxu0 0
  %1062 = vmatmul.mubr.bf16.gmra.mrb[0].mxu0 %v884
  %v1063 = vpop.f32.mrb[0].mxu0
  %v1064 = vadd.f32 %v915, %v1063
  %v1065 = vpop.f32.mrb[0].mxu0
  %v1066 = vpop.f32.mrb[0].mxu0
  %v1067 = vadd.f32 %v915, %v1066
  %v1068 = vpop.f32.mrb[0].mxu0
  %1069 = vmatprep.mubr.bf16.mxu0 0
  %1070 = vmatmul.mubr.bf16.gmra.mrb[0].mxu0 %v885
  %v1071 = vpop.f32.mrb[0].mxu0
  %v1072 = vadd.f32 %v915, %v1071
  %v1073 = vpop.f32.mrb[0].mxu0
  %v1074 = vpop.f32.mrb[0].mxu0
  %v1075 = vadd.f32 %v915, %v1074
  %v1076 = vpop.f32.mrb[0].mxu0
  %1077 = vmatprep.mubr.bf16.mxu0 0
  %1078 = vmatmul.mubr.bf16.gmra.mrb[0].mxu0 %v886
  %v1079 = vpop.f32.mrb[0].mxu0
  %v1080 = vadd.f32 %v915, %v1079
  %v1081 = vpop.f32.mrb[0].mxu0
  %v1082 = vpop.f32.mrb[0].mxu0
  %v1083 = vadd.f32 %v915, %v1082
  %v1084 = vpop.f32.mrb[0].mxu0
  %1085 = vmatprep.mubr.bf16.mxu0 0
  %1086 = vmatmul.mubr.bf16.gmra.mrb[0].mxu0 %v887
  %v1087 = vpop.f32.mrb[0].mxu0
  %v1088 = vadd.f32 %v915, %v1087
  %v1089 = vpop.f32.mrb[0].mxu0
  %v1090 = vpop.f32.mrb[0].mxu0
  %v1091 = vadd.f32 %v915, %v1090
  %v1092 = vpop.f32.mrb[0].mxu0
  %1093 = vmatprep.mubr.bf16.mxu0 0
  %1094 = vmatmul.mubr.bf16.gmra.mrb[0].mxu0 %v888
  %v1095 = vpop.f32.mrb[0].mxu0
  %v1096 = vadd.f32 %v915, %v1095
  %v1097 = vpop.f32.mrb[0].mxu0
  %v1098 = vpop.f32.mrb[0].mxu0
  %v1099 = vadd.f32 %v915, %v1098
  %v1100 = vpop.f32.mrb[0].mxu0
  %1101 = vmatprep.mubr.bf16.mxu0 0
  %1102 = vmatmul.mubr.bf16.gmra.mrb[0].mxu0 %v889
  %v1103 = vpop.f32.mrb[0].mxu0
  %v1104 = vadd.f32 %v915, %v1103
  %v1105 = vpop.f32.mrb[0].mxu0
  %v1106 = vpop.f32.mrb[0].mxu0
  %v1107 = vadd.f32 %v915, %v1106
  %v1108 = vpop.f32.mrb[0].mxu0
  %1109 = vmatprep.mubr.bf16.mxu0 0
  %1110 = vmatmul.mubr.bf16.gmra.mrb[0].mxu0 %v890
  %v1111 = vpop.f32.mrb[0].mxu0
  %v1112 = vadd.f32 %v915, %v1111
  %v1113 = vpop.f32.mrb[0].mxu0
  %v1114 = vpop.f32.mrb[0].mxu0
  %v1115 = vadd.f32 %v915, %v1114
  %v1116 = vpop.f32.mrb[0].mxu0
  %1117 = vmatprep.mubr.bf16.mxu0 0
  %1118 = vmatmul.mubr.bf16.gmra.mrb[0].mxu0 %v891
  %v1119 = vpop.f32.mrb[0].mxu0
  %v1120 = vadd.f32 %v915, %v1119
  %v1121 = vpop.f32.mrb[0].mxu0
  %v1122 = vpop.f32.mrb[0].mxu0
  %v1123 = vadd.f32 %v915, %v1122
  %v1124 = vpop.f32.mrb[0].mxu0
  %1125 = vdwg.mxu0
  %1126 = vst [vmem:[%s3] sm:$0xff] %v1000
  %1127 = vst [vmem:[%s3 + $0x8] sm:$0xff] %v1003
  %1128 = vst [vmem:[%s3 + $0x10] sm:$0xff] %v1008
  %1129 = vst [vmem:[%s3 + $0x18] sm:$0xff] %v1011
  %1130 = vst [vmem:[%s3 + $0x20] sm:$0xff] %v1016
  %1131 = vst [vmem:[%s3 + $0x28] sm:$0xff] %v1019
  %1132 = vst [vmem:[%s3 + $0x30] sm:$0xff] %v1024
  %1133 = vst [vmem:[%s3 + $0x38] sm:$0xff] %v1027
  %1134 = vst [vmem:[%s3 + $0x40] sm:$0xff] %v1032
  %1135 = vst [vmem:[%s3 + $0x48] sm:$0xff] %v1035
  %1136 = vst [vmem:[%s3 + $0x50] sm:$0xff] %v1040
  %1137 = vst [vmem:[%s3 + $0x58] sm:$0xff] %v1043
  %1138 = vst [vmem:[%s3 + $0x60] sm:$0xff] %v1048
  %1139 = vst [vmem:[%s3 + $0x68] sm:$0xff] %v1051
  %1140 = vst [vmem:[%s3 + $0x70] sm:$0xff] %v1056
  %1141 = vst [vmem:[%s3 + $0x78] sm:$0xff] %v1059
  %1142 = vst [vmem:[%s3 + $0x80] sm:$0xff] %v1064
  %1143 = vst [vmem:[%s3 + $0x88] sm:$0xff] %v1067
  %1144 = vst [vmem:[%s3 + $0x90] sm:$0xff] %v1072
  %1145 = vst [vmem:[%s3 + $0x98] sm:$0xff] %v1075
  %1146 = vst [vmem:[%s3 + $0xa0] sm:$0xff] %v1080
  %1147 = vst [vmem:[%s3 + $0xa8] sm:$0xff] %v1083
  %1148 = vst [vmem:[%s3 + $0xb0] sm:$0xff] %v1088
  %1149 = vst [vmem:[%s3 + $0xb8] sm:$0xff] %v1091
  %1150 = vst [vmem:[%s3 + $0xc0] sm:$0xff] %v1096
  %1151 = vst [vmem:[%s3 + $0xc8] sm:$0xff] %v1099
  %1152 = vst [vmem:[%s3 + $0xd0] sm:$0xff] %v1104
  %1153 = vst [vmem:[%s3 + $0xd8] sm:$0xff] %v1107
  %1154 = vst [vmem:[%s3 + $0xe0] sm:$0xff] %v1112
  %1155 = vst [vmem:[%s3 + $0xe8] sm:$0xff] %v1115
  %1156 = vst [vmem:[%s3 + $0xf0] sm:$0xff] %v1120
  %1157 = vst [vmem:[%s3 + $0xf8] sm:$0xff] %v1123
  // Predicated region
  $region14: #{_forward_impl.1} parent=0 // pred_check
    _
  $region15: #{_forward_impl.1} parent=0 // pred_check_branch
    %1159 = sbr.rel (0) target = $region17
  $region16: #{_forward_impl.1} parent=0 // pred_region
    _
  $region17: #{_forward_impl.1} parent=0 // pred_fallthru
    _
  // Predicated region
  $region18: #{_forward_impl.1} parent=0 // pred_check
    _
  $region19: #{_forward_impl.1} parent=0 // pred_check_branch
    %1161 = sbr.rel (0) target = $region21
  $region20: #{_forward_impl.1} parent=0 // pred_region
    _
  $region21: #{_forward_impl.1} parent=0 // pred_fallthru
    _

</llo_original>
